<compile_context>
chip_gen: v7x
topology: tpu7x:2x2x1
jax: 0.10.0
libtpu: 0.0.40
codegen_flags: <defaults>
</compile_context>

<pallas_src>
import jax
import jax.numpy as jnp
from jax.experimental import pallas as pl
from jax.experimental.pallas import tpu as pltpu


def _round_up(x, m):
    return ((x + m - 1) // m) * m


def _gcn_kernel(seq_ref, adj_ref, w_ref, bias_ref, alpha_ref, out_ref, acc_ref):
    # seq_ref  : (Bt, tk, F_in)   seq rows matching this adjacency column tile
    # adj_ref  : (tn, tk)
    # w_ref    : (F_in, Fo_p)     pre-transposed, F_out padded to lane multiple
    # bias_ref : (1, Fo_p)
    # alpha_ref: (1,) f32 scalar in SMEM
    # out_ref  : (Bt, tn, Fo_p)   resident across the k (reduction) axis
    # acc_ref  : (Bt, tn, Fo_p) f32 scratch accumulator
    k = pl.program_id(2)
    nk = pl.num_programs(2)

    @pl.when(k == 0)
    def _():
        acc_ref[...] = jnp.zeros_like(acc_ref)

    bt, tk, f_in = seq_ref.shape
    fo = w_ref.shape[1]

    # One MXU matmul for the whole batch tile: (Bt*tk, F_in) @ (F_in, Fo_p).
    x = seq_ref[...].reshape(bt * tk, f_in)
    fts = jnp.dot(x, w_ref[...], preferred_element_type=jnp.float32)
    fts = fts.reshape(bt, tk, fo).astype(adj_ref.dtype)

    # Adjacency matmul, accumulated over the k (column) tiles.
    # NOTE: when F_out > F_in one could instead do (adj @ seq) @ W_t to shrink the
    # N x N matmul's inner dim; here F_in == F_out so the order is irrelevant.
    adj_t = adj_ref[...]
    for b in range(bt):  # bt is small and static
        acc_ref[b] += jnp.dot(adj_t, fts[b], preferred_element_type=jnp.float32)

    @pl.when(k == nk - 1)
    def _():
        # Epilogue in f32 (v5e has no bf16 VPU/EUP path).
        y = acc_ref[...] + bias_ref[0].astype(jnp.float32)
        alpha = alpha_ref[0].astype(jnp.float32)
        out_ref[...] = jnp.where(y >= 0, y, alpha * y).astype(out_ref.dtype)


def gcn_layer(seq, adj, weight, bias, alpha, *,
              block_n=512, block_b=None, compute_dtype=None):
    """out = PReLU(adj @ (seq @ W^T) + bias), dense adjacency broadcast over batch."""
    B, N, F_in = seq.shape
    F_out = weight.shape[0]
    out_dtype = seq.dtype
    cdt = jnp.dtype(compute_dtype) if compute_dtype is not None else jnp.dtype(seq.dtype)

    # ---- host-side prep: pre-transpose W, pad F_out to a lane (128) multiple ----
    w_t = jnp.asarray(weight, cdt).T                      # (F_in, F_out)
    fo_p = _round_up(F_out, 128)
    if fo_p != F_out:
        w_t = jnp.pad(w_t, ((0, 0), (0, fo_p - F_out)))
    bias2 = jnp.asarray(bias, jnp.float32).reshape(1, F_out)
    if fo_p != F_out:
        bias2 = jnp.pad(bias2, ((0, 0), (0, fo_p - F_out)))
    alpha1 = jnp.asarray(alpha, jnp.float32).reshape(-1)[:1]   # default PReLU: 1 param

    seq_c = jnp.asarray(seq, cdt)
    adj_c = jnp.asarray(adj, cdt)

    # ---- tile N only when it is large; pad N up to the tile size ----
    if N <= block_n:
        tn = tk = N
        n_p = N
    else:
        tn = tk = block_n
        n_p = _round_up(N, block_n)
    if n_p != N:
        seq_c = jnp.pad(seq_c, ((0, 0), (0, n_p - N), (0, 0)))
        adj_c = jnp.pad(adj_c, ((0, n_p - N), (0, n_p - N)))
    n_row = n_p // tn
    n_col = n_p // tk

    # ---- batch tile: fold batch into one grid step, but keep a >=2-way parallel
    # leading axis when the row axis cannot provide it (v7x has 2 TensorCores) ----
    if block_b is None:
        block_b = B if (n_row >= 2 or B == 1) else max(1, pl.cdiv(B, 2))
    b_p = _round_up(B, block_b)
    if b_p != B:
        seq_c = jnp.pad(seq_c, ((0, b_p - B), (0, 0), (0, 0)))

    grid = (b_p // block_b, n_row, n_col)

    # ---- explicit VMEM budget (v7x physical VMEM is 64 MiB; leave headroom) ----
    isz = cdt.itemsize
    est = 2 * (tn * tk * isz                                     # adj tile (dbl buf)
               + block_b * tk * F_in * isz                       # seq tile
               + block_b * tn * fo_p * jnp.dtype(out_dtype).itemsize  # out tile
               + F_in * fo_p * isz + fo_p * 4)                   # w_t, bias
    est += block_b * tn * fo_p * 4                               # f32 accumulator
    vmem_limit = int(min(max(2 * est, 32 * 1024 * 1024), 60 * 1024 * 1024))

    grid_spec = pltpu.PrefetchScalarGridSpec(
        num_scalar_prefetch=0,
        grid=grid,
        in_specs=[
            pl.BlockSpec((block_b, tk, F_in), lambda b, i, k: (b, k, 0)),   # seq
            pl.BlockSpec((tn, tk), lambda b, i, k: (i, k)),                 # adj
            pl.BlockSpec((F_in, fo_p), lambda b, i, k: (0, 0)),             # W^T
            pl.BlockSpec((1, fo_p), lambda b, i, k: (0, 0)),                # bias
            pl.BlockSpec(memory_space=pltpu.MemorySpace.SMEM),              # alpha
        ],
        out_specs=pl.BlockSpec((block_b, tn, fo_p), lambda b, i, k: (b, i, 0)),
        scratch_shapes=[pltpu.VMEM((block_b, tn, fo_p), jnp.float32)],
    )

    out = pl.pallas_call(
        _gcn_kernel,
        out_shape=jax.ShapeDtypeStruct((b_p, n_p, fo_p), out_dtype),
        grid_spec=grid_spec,
        compiler_params=pltpu.CompilerParams(
            dimension_semantics=("parallel", "parallel", "arbitrary"),
            vmem_limit_bytes=vmem_limit,
        ),
    )(seq_c, adj_c, w_t, bias2, alpha1)

    if (b_p, n_p, fo_p) != (B, N, F_out):
        out = out[:B, :N, :F_out]
    return out


def xavier_uniform(key, shape):
    # matches torch.nn.init.xavier_uniform_ for a (fan_out, fan_in) Linear weight
    fan_out, fan_in = shape
    limit = (6.0 / (fan_in + fan_out)) ** 0.5
    return jax.random.uniform(key, shape, jnp.float32, -limit, limit)


if __name__ == "__main__":
    key = jax.random.PRNGKey(0)
    k_seq, k_adj, k_w = jax.random.split(key, 3)

    B, N, F_in, F_out = 2, 16, 32, 32

    seq = jax.random.normal(k_seq, (B, N, F_in), jnp.float32)
    adj_raw = jax.random.uniform(k_adj, (N, N), jnp.float32)
    adj = (adj_raw + adj_raw.T) / 2.0                    # symmetric dense adjacency

    weight = xavier_uniform(k_w, (F_out, F_in))          # fc.weight
    bias = jnp.zeros((F_out,), jnp.float32)              # self.bias, filled 0.0
    alpha = jnp.full((1,), 0.25, jnp.float32)            # PReLU default parameter

    out = gcn_layer(seq, adj, weight, bias, alpha)
    out = jax.block_until_ready(out)

    # reference check in plain JAX
    fts_ref = jnp.einsum("bnf,of->bno", seq, weight)
    out_ref = jnp.einsum("nm,bmo->bno", adj, fts_ref) + bias
    out_ref = jnp.where(out_ref >= 0, out_ref, alpha[0] * out_ref)
    assert out.shape == out_ref.shape
    assert jnp.allclose(out, out_ref, atol=1e-4, rtol=1e-4)

    print("KERNEL_OK")
</pallas_src>

<mosaic_0001>
module attributes {stable_mosaic.version = 11 : i64} {
  func.func @_gcn_kernel(%arg0: i32, %arg1: i32, %arg2: i32, %arg3: memref<1x16x32xf32, #tpu.memory_space<vmem>>, %arg4: memref<16x16xf32, #tpu.memory_space<vmem>>, %arg5: memref<32x128xf32, #tpu.memory_space<vmem>>, %arg6: memref<1x128xf32, #tpu.memory_space<vmem>>, %arg7: memref<1xf32, #tpu.memory_space<smem>>, %arg8: memref<1x16x128xf32, #tpu.memory_space<vmem>>, %arg9: memref<1x16x128xf32, #tpu.memory_space<vmem>>) attributes {dimension_semantics = [#tpu.dimension_semantics<parallel>, #tpu.dimension_semantics<parallel>, #tpu.dimension_semantics<arbitrary>], iteration_bounds = array<i64: 2, 1, 1>, scalar_prefetch = 0 : i64, scratch_operands = 1 : i64, tpu.core_type = #tpu.core_type<tc>, window_params = [{transform_indices = @transform_0, window_bounds = array<i64: 1, 16, 32>}, {transform_indices = @transform_1, window_bounds = array<i64: 16, 16>}, {pipeline_mode = #tpu.pipeline_mode<synchronous>, transform_indices = @transform_2, window_bounds = array<i64: 32, 128>}, {pipeline_mode = #tpu.pipeline_mode<synchronous>, transform_indices = @transform_3, window_bounds = array<i64: 1, 128>}, {transform_indices = @transform_4, window_bounds = array<i64: 1>}, {transform_indices = @transform_5, window_bounds = array<i64: 1, 16, 128>}]} {
    %c0_i32 = arith.constant 0 : i32
    %0 = arith.cmpi eq, %arg2, %c0_i32 : i32
    %1 = arith.extui %0 : i1 to i32
    %c0_i32_0 = arith.constant 0 : i32
    %2 = arith.cmpi ne, %1, %c0_i32_0 : i32
    scf.if %2 {
      %cst_16 = arith.constant 0.000000e+00 : f32
      %20 = vector.broadcast %cst_16 : f32 to vector<1x16x128xf32>
      %c0_17 = arith.constant 0 : index
      %c0_18 = arith.constant 0 : index
      %c0_19 = arith.constant 0 : index
      %21 = vector.load %arg9[%c0_17, %c0_18, %c0_19] : memref<1x16x128xf32, #tpu.memory_space<vmem>>, vector<1x16x128xf32>
      tpu.vector_store %arg9[%c0_17, %c0_18, %c0_19], %20 {strides = array<i32>} : memref<1x16x128xf32, #tpu.memory_space<vmem>>, vector<1x16x128xf32>,
    } else {
    }
    %c0 = arith.constant 0 : index
    %c0_1 = arith.constant 0 : index
    %c0_2 = arith.constant 0 : index
    %3 = vector.load %arg3[%c0, %c0_1, %c0_2] : memref<1x16x32xf32, #tpu.memory_space<vmem>>, vector<1x16x32xf32>
    %4 = vector.shape_cast %3 : vector<1x16x32xf32> to vector<16x32xf32>
    %c0_3 = arith.constant 0 : index
    %c0_4 = arith.constant 0 : index
    %5 = vector.load %arg5[%c0_3, %c0_4] : memref<32x128xf32, #tpu.memory_space<vmem>>, vector<32x128xf32>
    %cst = arith.constant dense<0.000000e+00> : vector<16x128xf32>
    %6 = tpu.matmul %4, %5, %cst {dimension_numbers = #tpu.dot_dimension_numbers<[1], [0], [0], [1], [0, 0, 1, 1], [], []>} : vector<16x32xf32>, vector<32x128xf32>, vector<16x128xf32> -> vector<16x128xf32>
    %7 = vector.shape_cast %6 : vector<16x128xf32> to vector<1x16x128xf32>
    %c0_5 = arith.constant 0 : index
    %c0_6 = arith.constant 0 : index
    %8 = vector.load %arg4[%c0_5, %c0_6] : memref<16x16xf32, #tpu.memory_space<vmem>>, vector<16x16xf32>
    %c0_7 = arith.constant 0 : index
    %c0_8 = arith.constant 0 : index
    %c0_9 = arith.constant 0 : index
    %9 = vector.load %arg9[%c0_7, %c0_8, %c0_9] : memref<1x16x128xf32, #tpu.memory_space<vmem>>, vector<1x16x128xf32>
    %10 = vector.shape_cast %9 : vector<1x16x128xf32> to vector<16x128xf32>
    %11 = vector.shape_cast %7 : vector<1x16x128xf32> to vector<16x128xf32>
    %cst_10 = arith.constant dense<0.000000e+00> : vector<16x128xf32>
    %12 = tpu.matmul %8, %11, %cst_10 {dimension_numbers = #tpu.dot_dimension_numbers<[1], [0], [0], [1], [0, 0, 1, 1], [], []>} : vector<16x16xf32>, vector<16x128xf32>, vector<16x128xf32> -> vector<16x128xf32>
    %13 = arith.addf %10, %12 : vector<16x128xf32>
    %c0_11 = arith.constant 0 : index
    %c0_12 = arith.constant 0 : index
    %c0_13 = arith.constant 0 : index
    %14 = vector.load %arg9[%c0_11, %c0_12, %c0_13] : memref<1x16x128xf32, #tpu.memory_space<vmem>>, vector<1x16x128xf32>
    %15 = vector.shape_cast %14 : vector<1x16x128xf32> to vector<16x128xf32>
    %16 = vector.shape_cast %13 : vector<16x128xf32> to vector<1x16x128xf32>
    tpu.vector_store %arg9[%c0_11, %c0_12, %c0_13], %16 {strides = array<i32>} : memref<1x16x128xf32, #tpu.memory_space<vmem>>, vector<1x16x128xf32>,
    %c0_i32_14 = arith.constant 0 : i32
    %17 = arith.cmpi eq, %arg2, %c0_i32_14 : i32
    %18 = arith.extui %17 : i1 to i32
    %c0_i32_15 = arith.constant 0 : i32
    %19 = arith.cmpi ne, %18, %c0_i32_15 : i32
    scf.if %19 {
      %c0_16 = arith.constant 0 : index
      %c0_17 = arith.constant 0 : index
      %c0_18 = arith.constant 0 : index
      %20 = vector.load %arg9[%c0_16, %c0_17, %c0_18] : memref<1x16x128xf32, #tpu.memory_space<vmem>>, vector<1x16x128xf32>
      %c0_19 = arith.constant 0 : index
      %c0_20 = arith.constant 0 : index
      %21 = vector.load %arg6[%c0_19, %c0_20] : memref<1x128xf32, #tpu.memory_space<vmem>>, vector<1x128xf32>
      %22 = vector.shape_cast %21 : vector<1x128xf32> to vector<128xf32>
      %23 = vector.shape_cast %22 : vector<128xf32> to vector<1x1x128xf32>
      %24 = vector.broadcast %23 : vector<1x1x128xf32> to vector<1x16x128xf32>
      %25 = arith.addf %20, %24 : vector<1x16x128xf32>
      %c0_21 = arith.constant 0 : index
      %26 = memref.load %arg7[%c0_21] : memref<1xf32, #tpu.memory_space<smem>>
      %cst_22 = arith.constant 0.000000e+00 : f32
      %27 = vector.broadcast %cst_22 : f32 to vector<1x16x128xf32>
      %28 = arith.cmpf oge, %25, %27 : vector<1x16x128xf32>
      %29 = vector.broadcast %26 : f32 to vector<1x16x128xf32>
      %30 = arith.mulf %29, %25 : vector<1x16x128xf32>
      %31 = arith.select %28, %25, %30 : vector<1x16x128xi1>, vector<1x16x128xf32>
      %c0_23 = arith.constant 0 : index
      %c0_24 = arith.constant 0 : index
      %c0_25 = arith.constant 0 : index
      %32 = vector.load %arg8[%c0_23, %c0_24, %c0_25] : memref<1x16x128xf32, #tpu.memory_space<vmem>>, vector<1x16x128xf32>
      tpu.vector_store %arg8[%c0_23, %c0_24, %c0_25], %31 {strides = array<i32>} : memref<1x16x128xf32, #tpu.memory_space<vmem>>, vector<1x16x128xf32>,
    } else {
    }
    return
  }
  func.func @transform_0(%arg0: i32, %arg1: i32, %arg2: i32) -> (i32, i32, i32) {
    %c0_i32 = arith.constant 0 : i32
    %c0_i32_0 = arith.constant 0 : i32
    return %arg0, %arg2, %c0_i32 : i32, i32, i32
  }
  func.func @transform_1(%arg0: i32, %arg1: i32, %arg2: i32) -> (i32, i32) {
    %c0_i32 = arith.constant 0 : i32
    return %arg1, %arg2 : i32, i32
  }
  func.func @transform_2(%arg0: i32, %arg1: i32, %arg2: i32) -> (i32, i32) {
    %c0_i32 = arith.constant 0 : i32
    %c0_i32_0 = arith.constant 0 : i32
    %c0_i32_1 = arith.constant 0 : i32
    return %c0_i32, %c0_i32_0 : i32, i32
  }
  func.func @transform_3(%arg0: i32, %arg1: i32, %arg2: i32) -> (i32, i32) {
    %c0_i32 = arith.constant 0 : i32
    %c0_i32_0 = arith.constant 0 : i32
    %c0_i32_1 = arith.constant 0 : i32
    return %c0_i32, %c0_i32_0 : i32, i32
  }
  func.func @transform_4(%arg0: i32, %arg1: i32, %arg2: i32) -> i32 {
    %c0_i32 = arith.constant 0 : i32
    %c0_i32_0 = arith.constant 0 : i32
    return %c0_i32 : i32
  }
  func.func @transform_5(%arg0: i32, %arg1: i32, %arg2: i32) -> (i32, i32, i32) {
    %c0_i32 = arith.constant 0 : i32
    %c0_i32_0 = arith.constant 0 : i32
    return %arg0, %arg1, %c0_i32 : i32, i32, i32
  }
}

</mosaic_0001>

<llo_original>
// kernel: tpu_custom_call.1
$region0: #{tpu_custom_call.1}
  #allocation0 [shape = 'u32[]', space=smem, size = 0x4, offset = 0x4, fixed_abs, tag = 'smem constant byte address 0x4 - core index']
  #allocation1 [shape = 'u32[144,128]{1,0:T(1,128)}', space=vmem, size = 0x12000, scoped, tag = 'internal scratch']
  #allocation2 [shape = 'f32[1,16,128]{2,1,0:T(8,128)}', space=vmem, size = 0x2000, scoped, tag = 'scratch operand']
  #allocation3 [shape = 'f32[1]{0:T(128)S(6)}', space=smem, size = 0x200, scoped, tag = 'scoped memory for tpu_custom_call.1']
  %s0 = inlined_call_operand.hbm [shape: f32[2,16,32], index: 0, kind: input, shape index: {}]
  %s1 = inlined_call_operand.hbm [shape: f32[16,16], index: 1, kind: input, shape index: {}]
  %s2 = inlined_call_operand.hbm [shape: f32[32,128], index: 2, kind: input, shape index: {}]
  %s3 = inlined_call_operand.vmem [shape: f32[1,128], index: 3, kind: input, shape index: {}]
  %s4 = inlined_call_operand.<no memory space> [shape: f32[1], index: 4, kind: input, shape index: {}]
  %s5 = inlined_call_operand.hbm [shape: f32[2,16,128], index: 5, kind: output, shape index: {}]
  %s6 = sld [smem:[#allocation0]]
  $region73: #{tpu_custom_call.1} parent=0
    _
  %s8 = ssub.s32 1, %s6
  %s9 = scalar_select 0, %s8, %s6
  %10 = sst [smem:[#allocation3]] %s4
  $region1: #{tpu_custom_call.1} parent=0
    #allocation4 [shape = 'u8[16384]{0}', space=vmem, size = 0x4000, scoped, tag = 'input window, operand 0']
    #allocation5 [shape = 's32[2]{0}', space=sflag, size = 0x8, scoped, tag = 'scoped memory for tpu_custom_call.1']
    #allocation6 [shape = 's32[2]{0}', space=sflag, size = 0x8, scoped, tag = 'scoped memory for tpu_custom_call.1']
    #allocation7 [shape = 'u8[8192]{0}', space=vmem, size = 0x2000, scoped, tag = 'input window, operand 1, single buffered']
    #allocation8 [shape = 's32[1]{0}', space=sflag, size = 0x4, scoped, tag = 'scoped memory for tpu_custom_call.1']
    #allocation9 [shape = 'u8[16384]{0}', space=vmem, size = 0x4000, scoped, tag = 'input window, operand 2, single buffered']
    #allocation10 [shape = 'u8[16384]{0}', space=vmem, size = 0x4000, scoped, tag = 'output window, operand 0']
    %11 = vsyncpa [#allocation5], 0
    %s12 = scalar_lea.sflag [#allocation5], 1
    %13 = vsyncpa %s12, 0
    %14 = vsyncpa [#allocation8], 0
    %15 = vsyncpa [#allocation6], 0
    %s16 = scalar_lea.sflag [#allocation6], 1
    %17 = vsyncpa %s16, 0
    loop: start=0, step=1, limit=4
    $region2: #{tpu_custom_call.1} parent=1 // loop_pre_header
      _
    $region3: #{tpu_custom_call.1} parent=1 // loop_header
      %s19 = sphi 0, %s23
      %p20 = scmp.ge.s32.totalorder %s19, 4
      %s26 = sphi 0, %s45
      %s27 = sphi 0, %s41
      %s28 = sphi 0, %s37
      %s29 = sphi 0, %s26
      %s30 = sphi 0, %s27
      %s31 = sphi 0, %s28
      %s32 = sphi 0, %s29
      %s33 = sphi 0, %s30
      %s34 = sphi 0, %s31
      %s50 = sphi 0, %s52
      %s53 = sphi 0, %s50
      %s54 = sphi 0, %s53
      %s70 = sphi 0, %s54
      %s78 = sphi 0, %s80
      %s81 = sphi 0, %s78
      %s82 = sphi 0, %s81
      %s98 = sphi 0, %s82
      %s102 = sphi 0, %s102
      %s104 = sphi 0, %s102
      %s105 = sphi 0, %s104
      %s119 = sphi 0, %s105
      %s123 = sphi 0, %s123
      %s125 = sphi 0, %s123
      %s126 = sphi 0, %s125
      %s140 = sphi 0, %s126
      %s144 = sphi 0, %s144
      %s146 = sphi 0, %s144
      %s147 = sphi 0, %s146
      %s161 = sphi 0, %s147
      %s169 = sphi 0, %s171
      %s172 = sphi 0, %s169
      %s173 = sphi 0, %s172
      %s189 = sphi 0, %s173
    $region4: #{tpu_custom_call.1} parent=1 // loop_header_branch
      %22 = sbr.rel (%p20) target = $region8
    $region5: #{tpu_custom_call.1} parent=1 // loop_body
      %s24 = ssub.s32 %s19, 1
      %s25 = ssub.s32 %s19, 2
      %s35 = sadd.s32 1, %s28
      %p36 = scmp.ge.s32.totalorder %s35, 1
      %s37 = scalar_select %p36, 0, %s35
      %s38 = sadd.s32 1, %s27
      %s39 = scalar_select %p36, %s38, %s27
      %p40 = scmp.ge.s32.totalorder %s39, 1
      %s41 = scalar_select %p40, 0, %s39
      %s42 = sadd.s32 1, %s26
      %s43 = scalar_select %p40, %s42, %s26
      %p44 = scmp.ge.s32.totalorder %s43, 2
      %s45 = scalar_select %p44, 0, %s43
      %s46 = ssub.s32 %s26, %s45
      %s47 = ssub.s32 %s28, %s37
      %s48 = sor.u32 %s46, %s47
      %p49 = scmp.eq.s32.totalorder %s48, 0
      %s51 = sadd.s32 %s50, 1
      %s52 = scalar_select %p49, %s50, %s51
      %p55 = pneg %p49
      %p56 = scmp.eq.s32.totalorder %s19, 1
      %p57 = por %p55, %p56
      %p58 = scmp.ne.s32.totalorder %s50, %s53
      %p59 = scmp.eq.s32.totalorder %s19, 0
      %p60 = por %p58, %p59
      %p61 = scmp.ne.s32.totalorder %s50, %s53
      %p62 = scmp.eq.s32.totalorder %s24, 1
      %p63 = por %p61, %p62
      %p64 = scmp.ne.s32.totalorder %s53, %s54
      %p65 = scmp.eq.s32.totalorder %s24, 0
      %p66 = por %p64, %p65
      %p67 = scmp.ne.s32.totalorder %s53, %s54
      %p68 = scmp.eq.s32.totalorder %s25, 1
      %p69 = por %p67, %p68
      %p71 = scmp.ne.s32.totalorder %s54, %s70
      %p72 = scmp.eq.s32.totalorder %s25, 0
      %p73 = por %p71, %p72
      %s74 = ssub.s32 %s27, %s41
      %s75 = ssub.s32 %s28, %s37
      %s76 = sor.u32 %s74, %s75
      %p77 = scmp.eq.s32.totalorder %s76, 0
      %s79 = sadd.s32 %s78, 1
      %s80 = scalar_select %p77, %s78, %s79
      %p83 = pneg %p77
      %p84 = scmp.eq.s32.totalorder %s19, 1
      %p85 = por %p83, %p84
      %p86 = scmp.ne.s32.totalorder %s78, %s81
      %p87 = scmp.eq.s32.totalorder %s19, 0
      %p88 = por %p86, %p87
      %p89 = scmp.ne.s32.totalorder %s78, %s81
      %p90 = scmp.eq.s32.totalorder %s24, 1
      %p91 = por %p89, %p90
      %p92 = scmp.ne.s32.totalorder %s81, %s82
      %p93 = scmp.eq.s32.totalorder %s24, 0
      %p94 = por %p92, %p93
      %p95 = scmp.ne.s32.totalorder %s81, %s82
      %p96 = scmp.eq.s32.totalorder %s25, 1
      %p97 = por %p95, %p96
      %p99 = scmp.ne.s32.totalorder %s82, %s98
      %p100 = scmp.eq.s32.totalorder %s25, 0
      %p101 = por %p99, %p100
      %s103 = sadd.s32 %s102, 1
      %p106 = scmp.eq.s32.totalorder %s19, 1
      %p107 = scmp.ne.s32.totalorder %s102, %s104
      %p108 = scmp.eq.s32.totalorder %s19, 0
      %p109 = por %p107, %p108
      %p110 = scmp.ne.s32.totalorder %s102, %s104
      %p111 = scmp.eq.s32.totalorder %s24, 1
      %p112 = por %p110, %p111
      %p113 = scmp.ne.s32.totalorder %s104, %s105
      %p114 = scmp.eq.s32.totalorder %s24, 0
      %p115 = por %p113, %p114
      %p116 = scmp.ne.s32.totalorder %s104, %s105
      %p117 = scmp.eq.s32.totalorder %s25, 1
      %p118 = por %p116, %p117
      %p120 = scmp.ne.s32.totalorder %s105, %s119
      %p121 = scmp.eq.s32.totalorder %s25, 0
      %p122 = por %p120, %p121
      %s124 = sadd.s32 %s123, 1
      %p127 = scmp.eq.s32.totalorder %s19, 1
      %p128 = scmp.ne.s32.totalorder %s123, %s125
      %p129 = scmp.eq.s32.totalorder %s19, 0
      %p130 = por %p128, %p129
      %p131 = scmp.ne.s32.totalorder %s123, %s125
      %p132 = scmp.eq.s32.totalorder %s24, 1
      %p133 = por %p131, %p132
      %p134 = scmp.ne.s32.totalorder %s125, %s126
      %p135 = scmp.eq.s32.totalorder %s24, 0
      %p136 = por %p134, %p135
      %p137 = scmp.ne.s32.totalorder %s125, %s126
      %p138 = scmp.eq.s32.totalorder %s25, 1
      %p139 = por %p137, %p138
      %p141 = scmp.ne.s32.totalorder %s126, %s140
      %p142 = scmp.eq.s32.totalorder %s25, 0
      %p143 = por %p141, %p142
      %s145 = sadd.s32 %s144, 1
      %p148 = scmp.eq.s32.totalorder %s19, 1
      %p149 = scmp.ne.s32.totalorder %s144, %s146
      %p150 = scmp.eq.s32.totalorder %s19, 0
      %p151 = por %p149, %p150
      %p152 = scmp.ne.s32.totalorder %s144, %s146
      %p153 = scmp.eq.s32.totalorder %s24, 1
      %p154 = por %p152, %p153
      %p155 = scmp.ne.s32.totalorder %s146, %s147
      %p156 = scmp.eq.s32.totalorder %s24, 0
      %p157 = por %p155, %p156
      %p158 = scmp.ne.s32.totalorder %s146, %s147
      %p159 = scmp.eq.s32.totalorder %s25, 1
      %p160 = por %p158, %p159
      %p162 = scmp.ne.s32.totalorder %s147, %s161
      %p163 = scmp.eq.s32.totalorder %s25, 0
      %p164 = por %p162, %p163
      %s165 = ssub.s32 %s26, %s45
      %s166 = ssub.s32 %s27, %s41
      %s167 = sor.u32 %s165, %s166
      %p168 = scmp.eq.s32.totalorder %s167, 0
      %s170 = sadd.s32 %s169, 1
      %s171 = scalar_select %p168, %s169, %s170
      %p174 = pneg %p168
      %p175 = scmp.eq.s32.totalorder %s19, 1
      %p176 = por %p174, %p175
      %p177 = scmp.ne.s32.totalorder %s169, %s172
      %p178 = scmp.eq.s32.totalorder %s19, 0
      %p179 = por %p177, %p178
      %p180 = scmp.ne.s32.totalorder %s169, %s172
      %p181 = scmp.eq.s32.totalorder %s24, 1
      %p182 = por %p180, %p181
      %p183 = scmp.ne.s32.totalorder %s172, %s173
      %p184 = scmp.eq.s32.totalorder %s24, 0
      %p185 = por %p183, %p184
      %p186 = scmp.ne.s32.totalorder %s172, %s173
      %p187 = scmp.eq.s32.totalorder %s25, 1
      %p188 = por %p186, %p187
      %p190 = scmp.ne.s32.totalorder %s173, %s189
      %p191 = scmp.eq.s32.totalorder %s25, 0
      %p192 = por %p190, %p191
      %p193 = scmp.le.s32.totalorder 1, %s19
      %p194 = scmp.lt.s32.totalorder %s19, 3
      %p195 = pnand %p193, %p194
      %p196 = pneg %p195
      // Predicated region
      $region9: #{tpu_custom_call.1} parent=5 // pred_check
        _
      $region10: #{tpu_custom_call.1} parent=5 // pred_check_branch
        %198 = sbr.rel (%p195) target = $region12
      $region11: #{tpu_custom_call.1} parent=5 // pred_region
        %s199 = ssub.s32 %s19, 1
        // Predicated region
        $region13: #{tpu_custom_call.1} parent=11 // pred_check
          %p200 = pneg %p94
        $region14: #{tpu_custom_call.1} parent=11 // pred_check_branch
          %202 = sbr.rel (%p200) target = $region16
        $region15: #{tpu_custom_call.1} parent=11 // pred_region
          %s203 = smul.u32 2, %s30
          %s205 = ssub.s32 256, 256
          %206 = vsyncadd [#allocation8], %s205
          %s207 = sadd.s32 %s31, %s203
          %s208 = smul.addr %s207, 128
          %s209 = scalar_lea.hbm %s1, %s208
          %s210 = sshll.u32 [#allocation7], 4
          %s211 = int_to_ptr.vmem [resolvable:$true] %s210
          %216 = dma.hbm_to_vmem [thread:$0]  %s209, 256, %s211, [#allocation8], 128, 128, 8
        $region16: #{tpu_custom_call.1} parent=11 // pred_fallthru
          _
        // Predicated region
        $region17: #{tpu_custom_call.1} parent=11 // pred_check
          %p217 = pneg %p115
        $region18: #{tpu_custom_call.1} parent=11 // pred_check_branch
          %219 = sbr.rel (%p217) target = $region20
        $region19: #{tpu_custom_call.1} parent=11 // pred_region
          %s221 = ssub.s32 512, 512
          %222 = vsyncadd [#allocation8], %s221
          %s223 = sshll.u32 [#allocation9], 4
          %s224 = int_to_ptr.vmem [resolvable:$true] %s223
          %229 = dma.hbm_to_vmem [thread:$0]  %s2, 512, %s224, [#allocation8], 128, 128, 8
        $region20: #{tpu_custom_call.1} parent=11 // pred_fallthru
          _
        // Predicated region
        $region21: #{tpu_custom_call.1} parent=11 // pred_check
          %p230 = pneg %p136
        $region22: #{tpu_custom_call.1} parent=11 // pred_check_branch
          %232 = sbr.rel (%p230) target = $region24
        $region23: #{tpu_custom_call.1} parent=11 // pred_region
          _
        $region24: #{tpu_custom_call.1} parent=11 // pred_fallthru
          _
        // Predicated region
        $region25: #{tpu_custom_call.1} parent=11 // pred_check
          %p233 = pneg %p157
        $region26: #{tpu_custom_call.1} parent=11 // pred_check_branch
          %235 = sbr.rel (%p233) target = $region28
        $region27: #{tpu_custom_call.1} parent=11 // pred_region
          _
        $region28: #{tpu_custom_call.1} parent=11 // pred_fallthru
          _
      $region12: #{tpu_custom_call.1} parent=5 // pred_fallthru
        _
      %p236 = scmp.lt.s32.totalorder %s19, 2
      // Predicated region
      $region29: #{tpu_custom_call.1} parent=5 // pred_check
        %p237 = pneg %p236
      $region30: #{tpu_custom_call.1} parent=5 // pred_check_branch
        %239 = sbr.rel (%p237) target = $region32
      $region31: #{tpu_custom_call.1} parent=5 // pred_region
        // Predicated region
        $region33: #{tpu_custom_call.1} parent=31 // pred_check
          %p240 = pneg %p60
        $region34: #{tpu_custom_call.1} parent=31 // pred_check_branch
          %242 = sbr.rel (%p240) target = $region36
        $region35: #{tpu_custom_call.1} parent=31 // pred_region
          %s243 = sand.u32 %s50, 1
          %s244 = scalar_lea.sflag [#allocation5], %s243
          %s245 = sand.u32 %s50, 1
          %s246 = smul.addr %s245, 16
          %s247 = scalar_lea.vmem [#allocation4], %s246
          %s248 = smul.u32 2, %s28
          %s250 = ssub.s32 256, 256
          %251 = vsyncadd %s244, %s250
          %s252 = smul.addr %s26, 2
          %s253 = sadd.s32 %s248, %s252
          %s254 = smul.addr %s253, 128
          %s255 = scalar_lea.hbm %s0, %s254
          %s256 = sshll.u32 %s247, 4
          %s257 = int_to_ptr.vmem [resolvable:$true] %s256
          %262 = dma.hbm_to_vmem [thread:$0]  %s255, 256, %s257, %s244, 128, 128, 8
        $region36: #{tpu_custom_call.1} parent=31 // pred_fallthru
          _
      $region32: #{tpu_custom_call.1} parent=5 // pred_fallthru
        _
      %p263 = scmp.le.s32.totalorder 1, %s19
      %p264 = scmp.lt.s32.totalorder %s19, 3
      %p265 = pnand %p263, %p264
      %p266 = pneg %p265
      // Predicated region
      $region37: #{tpu_custom_call.1} parent=5 // pred_check
        _
      $region38: #{tpu_custom_call.1} parent=5 // pred_check_branch
        %268 = sbr.rel (%p265) target = $region40
      $region39: #{tpu_custom_call.1} parent=5 // pred_region
        %s269 = ssub.s32 %s19, 1
        %s270 = sand.u32 %s53, 1
        %s271 = scalar_lea.sflag [#allocation5], %s270
        %s272 = sand.u32 %s53, 1
        %s273 = smul.addr %s272, 16
        %s274 = scalar_lea.vmem [#allocation4], %s273
        // Predicated region
        $region41: #{tpu_custom_call.1} parent=39 // pred_check
          %p275 = pneg %p66
        $region42: #{tpu_custom_call.1} parent=39 // pred_check_branch
          %277 = sbr.rel (%p275) target = $region44
        $region43: #{tpu_custom_call.1} parent=39 // pred_region
          %278 = dma.done %s271, 256
        $region44: #{tpu_custom_call.1} parent=39 // pred_fallthru
          _
        // Predicated region
        $region45: #{tpu_custom_call.1} parent=39 // pred_check
          %p279 = pneg %p94
        $region46: #{tpu_custom_call.1} parent=39 // pred_check_branch
          %281 = sbr.rel (%p279) target = $region48
        $region47: #{tpu_custom_call.1} parent=39 // pred_region
          %282 = dma.done [#allocation8], 256
        $region48: #{tpu_custom_call.1} parent=39 // pred_fallthru
          _
        // Predicated region
        $region49: #{tpu_custom_call.1} parent=39 // pred_check
          %p283 = pneg %p115
        $region50: #{tpu_custom_call.1} parent=39 // pred_check_branch
          %285 = sbr.rel (%p283) target = $region52
        $region51: #{tpu_custom_call.1} parent=39 // pred_region
          %286 = dma.done [#allocation8], 512
        $region52: #{tpu_custom_call.1} parent=39 // pred_fallthru
          _
        %s287 = sand.u32 %s53, 1
        %s288 = scalar_lea.sflag [#allocation5], %s287
        %s289 = sand.u32 %s53, 1
        %s290 = smul.addr %s289, 16
        %s291 = scalar_lea.vmem [#allocation4], %s290
        %p292 = pneg %p66
        %p293 = pneg %p63
        %p294 = pneg %p94
        %p295 = pneg %p91
        %p296 = pneg %p115
        %p297 = pneg %p112
        %p298 = pneg %p136
        %p299 = pneg %p133
        %p300 = pneg %p157
        %p301 = pneg %p154
        %p302 = pneg %p185
        %p303 = pneg %p182
        %s304 = sand.u32 %s172, 1
        %s305 = scalar_lea.sflag [#allocation6], %s304
        %s306 = sand.u32 %s172, 1
        %s307 = smul.addr %s306, 16
        %s308 = scalar_lea.vmem [#allocation10], %s307
        %s309 = smul.u32 2, %s31
        %s310 = smul.u32 2, %s30
        %s311 = smul.u32 2, %s30
        %p312 = scmp.eq.s32.totalorder %s31, 0
        // Predicated region
        $region53: #{tpu_custom_call.1} parent=39 // pred_check
          %p313 = pneg %p312
        $region54: #{tpu_custom_call.1} parent=39 // pred_check_branch
          %315 = sbr.rel (%p313) target = $region56
        $region55: #{tpu_custom_call.1} parent=39 // pred_region
          %316 = vst [vmem:[#allocation2] sm:$0xff] 0.0
          %317 = vst [vmem:[#allocation2 + $0x8] sm:$0xff] 0.0
        $region56: #{tpu_custom_call.1} parent=39 // pred_fallthru
          _
        %v318 = vld [vmem:[%s274] sm:$0xff]
        %v319 = vld [vmem:[%s274 + $0x8] sm:$0xff]
        %v320 = vld [vmem:[#allocation9] sm:$0xff]
        %v321 = vld [vmem:[#allocation9 + $0x8] sm:$0xff]
        %v322 = vld [vmem:[#allocation9 + $0x10] sm:$0xff]
        %v323 = vld [vmem:[#allocation9 + $0x18] sm:$0xff]
        %vm324 = vcmask 261120
        %v326 = vsel %vm324, %v318, 0
        %v329 = vsel %vm324, %v319, 0
        %331 = vmatprep.subr.mxu0 0.0
        %332 = vmatpush1.msra.mxu0 %v320
        %333 = vmatprep.subr.mxu0 0.0
        %334 = vmatpush1.msra.mxu0 %v321
        %335 = vmatprep.subr.mxu0 0.0
        %336 = vmatpush1.msra.mxu0 %v322
        %337 = vmatprep.subr.mxu0 0.0
        %338 = vmatpush1.msra.mxu0 %v323
        %339 = vmatprep.subr.mxu0 0.0
        %340 = vmatpush1.msra.mxu0 0.0
        %341 = vmatprep.subr.mxu0 0.0
        %342 = vmatpush1.msra.mxu0 0.0
        %343 = vmatprep.subr.mxu0 0.0
        %344 = vmatpush1.msra.mxu0 0.0
        %345 = vmatprep.subr.mxu0 0.0
        %346 = vmatpush1.msra.mxu0 0.0
        %347 = vmatprep.subr.mxu0 0.0
        %348 = vmatpush1.msra.mxu0 0.0
        %349 = vmatprep.subr.mxu0 0.0
        %350 = vmatpush1.msra.mxu0 0.0
        %351 = vmatprep.subr.mxu0 0.0
        %352 = vmatpush1.msra.mxu0 0.0
        %353 = vmatprep.subr.mxu0 0.0
        %354 = vmatpush1.msra.mxu0 0.0
        %355 = vmatprep.subr.mxu0 0.0
        %356 = vmatpush1.msra.mxu0 0.0
        %357 = vmatprep.subr.mxu0 0.0
        %358 = vmatpush1.msra.mxu0 0.0
        %359 = vmatprep.subr.mxu0 0.0
        %360 = vmatpush1.msra.mxu0 0.0
        %361 = vmatprep.subr.mxu0 0.0
        %362 = vmatpush1.msra.mxu0 0.0
        %363 = vmatprep.subr.mxu0 0.0
        %364 = vmatpush1.msra.mxu0 0.0
        %365 = vmatprep.subr.mxu0 0.0
        %366 = vmatpush1.msra.mxu0 0.0
        %367 = vmatprep.subr.mxu0 0.0
        %368 = vmatpush1.msra.mxu0 0.0
        %369 = vmatprep.subr.mxu0 0.0
        %370 = vmatpush1.msra.mxu0 0.0
        %371 = vmatprep.subr.mxu0 0.0
        %372 = vmatpush1.msra.mxu0 0.0
        %373 = vmatprep.subr.mxu0 0.0
        %374 = vmatpush1.msra.mxu0 0.0
        %375 = vmatprep.subr.mxu0 0.0
        %376 = vmatpush1.msra.mxu0 0.0
        %377 = vmatprep.subr.mxu0 0.0
        %378 = vmatpush1.msra.mxu0 0.0
        %379 = vmatprep.subr.mxu0 0.0
        %380 = vmatpush1.msra.mxu0 0.0
        %381 = vmatprep.subr.mxu0 0.0
        %382 = vmatpush1.msra.mxu0 0.0
        %383 = vmatprep.subr.mxu0 0.0
        %384 = vmatpush1.msra.mxu0 0.0
        %385 = vmatprep.subr.mxu0 0.0
        %386 = vmatpush1.msra.mxu0 0.0
        %387 = vmatprep.subr.mxu0 0.0
        %388 = vmatpush1.msra.mxu0 0.0
        %389 = vmatprep.subr.mxu0 0.0
        %390 = vmatpush1.msra.mxu0 0.0
        %391 = vmatprep.subr.mxu0 0.0
        %392 = vmatpush1.msra.mxu0 0.0
        %393 = vmatprep.subr.mxu0 0.0
        %394 = vmatpush1.msra.mxu0 0.0
        %395 = vmatprep.mubr.f32.mxu0 0.0
        %396 = vmatmul.mubr.f32.gmra.mrb[0].mxu0 %v326
        %v397 = vpop.f32.mrb[0].mxu0
        %v398 = vadd.f32 0.0, %v397
        %v399 = vpop.f32.mrb[0].mxu0
        %400 = vmatprep.mubr.f32.mxu0 0.0
        %401 = vmatmul.mubr.f32.gmra.mrb[0].mxu0 %v329
        %v402 = vpop.f32.mrb[0].mxu0
        %v403 = vadd.f32 0.0, %v402
        %v404 = vpop.f32.mrb[0].mxu0
        %405 = vdwg.mxu0
        %v406 = vld [vmem:[#allocation7] sm:$0xff]
        %v407 = vld [vmem:[#allocation7 + $0x8] sm:$0xff]
        %v408 = vld [vmem:[#allocation2] sm:$0xff]
        %v409 = vld [vmem:[#allocation2 + $0x8] sm:$0xff]
        %vm410 = vcmask 130048
        %v412 = vsel %vm410, %v406, 0
        %v415 = vsel %vm410, %v407, 0
        %417 = vmatprep.subr.mxu0 0.0
        %418 = vmatpush1.msra.mxu0 %v398
        %419 = vmatprep.subr.mxu0 0.0
        %420 = vmatpush1.msra.mxu0 %v403
        %421 = vmatprep.subr.mxu0 0.0
        %422 = vmatpush1.msra.mxu0 0.0
        %423 = vmatprep.subr.mxu0 0.0
        %424 = vmatpush1.msra.mxu0 0.0
        %425 = vmatprep.subr.mxu0 0.0
        %426 = vmatpush1.msra.mxu0 0.0
        %427 = vmatprep.subr.mxu0 0.0
        %428 = vmatpush1.msra.mxu0 0.0
        %429 = vmatprep.subr.mxu0 0.0
        %430 = vmatpush1.msra.mxu0 0.0
        %431 = vmatprep.subr.mxu0 0.0
        %432 = vmatpush1.msra.mxu0 0.0
        %433 = vmatprep.subr.mxu0 0.0
        %434 = vmatpush1.msra.mxu0 0.0
        %435 = vmatprep.subr.mxu0 0.0
        %436 = vmatpush1.msra.mxu0 0.0
        %437 = vmatprep.subr.mxu0 0.0
        %438 = vmatpush1.msra.mxu0 0.0
        %439 = vmatprep.subr.mxu0 0.0
        %440 = vmatpush1.msra.mxu0 0.0
        %441 = vmatprep.subr.mxu0 0.0
        %442 = vmatpush1.msra.mxu0 0.0
        %443 = vmatprep.subr.mxu0 0.0
        %444 = vmatpush1.msra.mxu0 0.0
        %445 = vmatprep.subr.mxu0 0.0
        %446 = vmatpush1.msra.mxu0 0.0
        %447 = vmatprep.subr.mxu0 0.0
        %448 = vmatpush1.msra.mxu0 0.0
        %449 = vmatprep.subr.mxu0 0.0
        %450 = vmatpush1.msra.mxu0 0.0
        %451 = vmatprep.subr.mxu0 0.0
        %452 = vmatpush1.msra.mxu0 0.0
        %453 = vmatprep.subr.mxu0 0.0
        %454 = vmatpush1.msra.mxu0 0.0
        %455 = vmatprep.subr.mxu0 0.0
        %456 = vmatpush1.msra.mxu0 0.0
        %457 = vmatprep.subr.mxu0 0.0
        %458 = vmatpush1.msra.mxu0 0.0
        %459 = vmatprep.subr.mxu0 0.0
        %460 = vmatpush1.msra.mxu0 0.0
        %461 = vmatprep.subr.mxu0 0.0
        %462 = vmatpush1.msra.mxu0 0.0
        %463 = vmatprep.subr.mxu0 0.0
        %464 = vmatpush1.msra.mxu0 0.0
        %465 = vmatprep.subr.mxu0 0.0
        %466 = vmatpush1.msra.mxu0 0.0
        %467 = vmatprep.subr.mxu0 0.0
        %468 = vmatpush1.msra.mxu0 0.0
        %469 = vmatprep.subr.mxu0 0.0
        %470 = vmatpush1.msra.mxu0 0.0
        %471 = vmatprep.subr.mxu0 0.0
        %472 = vmatpush1.msra.mxu0 0.0
        %473 = vmatprep.subr.mxu0 0.0
        %474 = vmatpush1.msra.mxu0 0.0
        %475 = vmatprep.subr.mxu0 0.0
        %476 = vmatpush1.msra.mxu0 0.0
        %477 = vmatprep.subr.mxu0 0.0
        %478 = vmatpush1.msra.mxu0 0.0
        %479 = vmatprep.subr.mxu0 0.0
        %480 = vmatpush1.msra.mxu0 0.0
        %481 = vmatprep.mubr.f32.mxu0 0.0
        %482 = vmatmul.mubr.f32.gmra.mrb[0].mxu0 %v412
        %v483 = vpop.f32.mrb[0].mxu0
        %v484 = vadd.f32 0.0, %v483
        %v485 = vpop.f32.mrb[0].mxu0
        %486 = vmatprep.mubr.f32.mxu0 0.0
        %487 = vmatmul.mubr.f32.gmra.mrb[0].mxu0 %v415
        %v488 = vpop.f32.mrb[0].mxu0
        %v489 = vadd.f32 0.0, %v488
        %v490 = vpop.f32.mrb[0].mxu0
        %491 = vdwg.mxu0
        %v492 = vadd.f32 %v408, %v484
        %v493 = vadd.f32 %v409, %v489
        %494 = vst [vmem:[#allocation2] sm:$0xff] %v492
        %495 = vst [vmem:[#allocation2 + $0x8] sm:$0xff] %v493
        // Predicated region
        $region57: #{tpu_custom_call.1} parent=39 // pred_check
          %p496 = pneg %p312
        $region58: #{tpu_custom_call.1} parent=39 // pred_check_branch
          %498 = sbr.rel (%p496) target = $region60
        $region59: #{tpu_custom_call.1} parent=39 // pred_region
          %v499 = vld [vmem:[#allocation2] sm:$0xff]
          %v500 = vld [vmem:[#allocation2 + $0x8] sm:$0xff]
          %v501 = vld [vmem:[%s3] sm:$0x1]
          %v503 = vlaneseq
          %v504 = vshrl.u32 %v503, 7
          %v505 = vsub.s32 0, %v504
          %v506 = vrot.slane %v501, %v505
          %v508 = vadd.f32 %v499, %v506
          %v509 = vadd.f32 %v500, %v506
          %s510 = sld [smem:[#allocation3]]
          %vm511 = vcmp.ge.f32.partialorder %v508, 0.0
          %vm512 = vcmp.ge.f32.partialorder %v509, 0.0
          %v513 = vstv %s510
          %v514 = vmul.f32 %v513, %v508
          %v515 = vmul.f32 %v513, %v509
          %v516 = vsel %vm511, %v508, %v514
          %v517 = vsel %vm512, %v509, %v515
          %518 = vst [vmem:[%s308] sm:$0xff] %v516
          %519 = vst [vmem:[%s308 + $0x8] sm:$0xff] %v517
        $region60: #{tpu_custom_call.1} parent=39 // pred_fallthru
          _
        %s520 = sand.u32 %s172, 1
        %s521 = scalar_lea.sflag [#allocation6], %s520
        %s522 = sand.u32 %s172, 1
        %s523 = smul.addr %s522, 16
        %s524 = scalar_lea.vmem [#allocation10], %s523
        // Predicated region
        $region61: #{tpu_custom_call.1} parent=39 // pred_check
          %p525 = pneg %p182
        $region62: #{tpu_custom_call.1} parent=39 // pred_check_branch
          %527 = sbr.rel (%p525) target = $region64
        $region63: #{tpu_custom_call.1} parent=39 // pred_region
          %s528 = smul.u32 2, %s30
          %s530 = ssub.s32 256, 256
          %531 = vsyncadd %s521, %s530
          %s532 = smul.addr %s29, 2
          %s533 = sadd.s32 %s528, %s532
          %s534 = smul.addr %s533, 128
          %s535 = scalar_lea.hbm %s5, %s534
          %s536 = sshll.u32 %s524, 4
          %s537 = int_to_ptr.vmem [resolvable:$true] %s536
          %542 = dma.vmem_to_hbm [thread:$0]  %s537, 256, %s535, %s521, 128, 128, 8
        $region64: #{tpu_custom_call.1} parent=39 // pred_fallthru
          _
      $region40: #{tpu_custom_call.1} parent=5 // pred_fallthru
        _
      %p543 = scmp.le.s32.totalorder 2, %s19
      // Predicated region
      $region65: #{tpu_custom_call.1} parent=5 // pred_check
        %p544 = pneg %p543
      $region66: #{tpu_custom_call.1} parent=5 // pred_check_branch
        %546 = sbr.rel (%p544) target = $region68
      $region67: #{tpu_custom_call.1} parent=5 // pred_region
        %s547 = ssub.s32 %s19, 2
        // Predicated region
        $region69: #{tpu_custom_call.1} parent=67 // pred_check
          %p548 = pneg %p188
        $region70: #{tpu_custom_call.1} parent=67 // pred_check_branch
          %550 = sbr.rel (%p548) target = $region72
        $region71: #{tpu_custom_call.1} parent=67 // pred_region
          %s551 = sand.u32 %s173, 1
          %s552 = scalar_lea.sflag [#allocation6], %s551
          %s553 = sand.u32 %s173, 1
          %s554 = smul.addr %s553, 16
          %s555 = scalar_lea.vmem [#allocation10], %s554
          %556 = dma.done %s552, 256
        $region72: #{tpu_custom_call.1} parent=67 // pred_fallthru
          _
      $region68: #{tpu_custom_call.1} parent=5 // pred_fallthru
        _
    $region6: #{tpu_custom_call.1} parent=1 // loop_footer
      %s23 = sadd.s32 1, %s19
    $region7: #{tpu_custom_call.1} parent=1 // loop_footer_branch
      %18 = sbr.rel target = $region3
    $region8: #{tpu_custom_call.1} parent=1 // loop_exit
      _
    %557 = vsyncpa [#allocation5], 1
    %s558 = scalar_lea.sflag [#allocation5], 1
    %559 = vsyncpa %s558, 1
    %560 = vsyncpa [#allocation8], 1
    %561 = vsyncpa [#allocation6], 1
    %s562 = scalar_lea.sflag [#allocation6], 1
    %563 = vsyncpa %s562, 1

</llo_original>
